<compile_context>
chip_gen: v7x
topology: tpu7x:2x2x1
jax: 0.10.0
libtpu: 0.0.40
codegen_flags: <defaults>
</compile_context>

<pallas_src>
import functools
import math

import jax
import jax.numpy as jnp
from jax.experimental import pallas as pl
from jax.experimental.pallas import tpu as pltpu


def _round_up(n, m):
    return ((n + m - 1) // m) * m


# ----------------------------- Pallas kernel --------------------------------
def _kan_kernel(xb_ref, bwf_ref, bbf_ref, wf_ref, o_ref,
                *, beta, k_spline, k_base, mxu_dtype):
    # xb_ref:  (TB, K_pad)    x replicated along features with period I (batch tile)
    # bwf_ref: (1, K_pad)     flattened basis weights  (zeros outside spline cols)
    # bbf_ref: (1, K_pad)     flattened basis biases   (zeros outside spline cols)
    # wf_ref:  (K_pad, O_pad) fused weight [W_spline ; scale_base.T ; bias ; 0-pad]
    # o_ref:   (TB, O_pad)    output tile (lane-dense)
    xb = xb_ref[...]                                           # (TB, K_pad) f32

    # Spline features (valid on cols < k_spline; harmless exp(0)=1 elsewhere, masked).
    z = xb * bwf_ref[...] + bbf_ref[...]
    spline = jnp.exp((-beta) * z * z)

    # Column-index based feature selection: [spline | cos(x) | 1 | 0].
    col = jax.lax.broadcasted_iota(jnp.int32, xb.shape, 1)
    k_bias = k_spline + k_base
    feats = jnp.where(
        col < k_spline, spline,
        jnp.where(col < k_bias, jnp.cos(xb),
                  jnp.where(col < k_bias + 1,
                            jnp.ones_like(xb), jnp.zeros_like(xb))))

    w = wf_ref[...]
    if mxu_dtype is not None:                                  # v6e/v7x: bf16 MXU operands
        feats = feats.astype(mxu_dtype)
        w = w.astype(mxu_dtype)

    o_ref[...] = jnp.dot(feats, w,
                         preferred_element_type=jnp.float32).astype(o_ref.dtype)


# ------------------------------- wrapper -------------------------------------
def kan_layer_forward(x, basis_w, basis_b, weights, bias, scale_base, beta,
                      *, tb=256, mxu_dtype=None):
    """x: (..., I)  ->  (..., O).  Parameters in the PyTorch layouts:
       basis_w/basis_b: (J, I), weights: (O, J*I), bias: (O,), scale_base: (O, I)."""
    lead = x.shape[:-1]
    I = x.shape[-1]
    x2 = x.reshape(-1, I).astype(jnp.float32)
    B = x2.shape[0]
    J = basis_w.shape[0]
    O = bias.shape[0]
    assert weights.shape == (O, J * I)

    LANE = 128
    k_spline = J * I
    k_base = I
    k_true = k_spline + k_base + 1                 # +1 = constant-one row for the bias
    K_pad = _round_up(k_true, LANE)
    O_pad = _round_up(O, LANE)

    # Fused weight (K_pad, O_pad): [weights.T ; scale_base.T ; bias ; zero pad], O zero-padded.
    wf = jnp.zeros((K_pad, O_pad), jnp.float32)
    wf = wf.at[:k_spline, :O].set(weights.astype(jnp.float32).T)
    wf = wf.at[k_spline:k_spline + I, :O].set(scale_base.astype(jnp.float32).T)
    wf = wf.at[k_spline + I, :O].set(bias.astype(jnp.float32))

    # Flattened basis params, padded with zeros beyond the spline columns.
    bwf = jnp.zeros((1, K_pad), jnp.float32).at[0, :k_spline].set(
        basis_w.astype(jnp.float32).reshape(-1))
    bbf = jnp.zeros((1, K_pad), jnp.float32).at[0, :k_spline].set(
        basis_b.astype(jnp.float32).reshape(-1))

    # Replicate x along features with period I so column c holds x[:, c % I].
    rep = -(-K_pad // I)
    x_big = jnp.tile(x2, (1, rep))[:, :K_pad]                  # (B, K_pad)

    # Batch tiling: multiple of 8, pad B up instead of asserting.
    tb_eff = min(tb, _round_up(B, 8))
    B_pad = _round_up(B, tb_eff)
    if B_pad != B:
        x_big = jnp.pad(x_big, ((0, B_pad - B), (0, 0)))

    kernel = functools.partial(_kan_kernel, beta=float(beta),
                               k_spline=k_spline, k_base=k_base,
                               mxu_dtype=mxu_dtype)

    out = pl.pallas_call(
        kernel,
        out_shape=jax.ShapeDtypeStruct((B_pad, O_pad), jnp.float32),
        grid_spec=pltpu.PrefetchScalarGridSpec(
            num_scalar_prefetch=0,
            grid=(B_pad // tb_eff,),
            in_specs=[
                pl.BlockSpec((tb_eff, K_pad), lambda b: (b, 0)),          # x_big tile
                pl.BlockSpec(memory_space=pltpu.MemorySpace.VMEM),        # bwf (resident)
                pl.BlockSpec(memory_space=pltpu.MemorySpace.VMEM),        # bbf (resident)
                pl.BlockSpec(memory_space=pltpu.MemorySpace.VMEM),        # W_fused (resident)
            ],
            out_specs=pl.BlockSpec((tb_eff, O_pad), lambda b: (b, 0)),
        ),
        compiler_params=pltpu.CompilerParams(
            dimension_semantics=("parallel",)),
    )(x_big, bwf, bbf, wf)

    y = out[:B, :O]
    return y.reshape(*lead, O)


# -------------------- deterministic parameter construction ------------------
def _kaiming_uniform(key, shape, a, fan_in, dtype=jnp.float32):
    gain = math.sqrt(2.0 / (1.0 + a * a))
    bound = gain * math.sqrt(3.0 / fan_in)
    return jax.random.uniform(key, shape, dtype, minval=-bound, maxval=bound)


def make_kan_params(key, in_features, out_features, num_basis, dtype=jnp.float32):
    kb, kw, kbias, ksb = jax.random.split(key, 4)

    # KANBasis params
    basis_w = _kaiming_uniform(kb, (num_basis, in_features),
                               a=math.sqrt(5.0) / in_features,
                               fan_in=in_features, dtype=dtype)
    bbound = (1.0 / math.sqrt(in_features)) / in_features
    basis_b = jnp.tile(
        jnp.linspace(-bbound, bbound, num_basis, dtype=dtype)[:, None],
        (1, in_features))
    k_beta = max(math.log2(num_basis), 1.0)
    beta = (2.0 / k_beta * num_basis / 2.0) ** 2                 # (num_basis / k)^2

    # KANLayer params
    fan_in_w = num_basis * in_features
    weights = _kaiming_uniform(kw, (out_features, fan_in_w),
                               a=math.sqrt(5.0), fan_in=fan_in_w, dtype=dtype)
    bound = 1.0 / math.sqrt(fan_in_w)
    bias = jax.random.uniform(kbias, (out_features,), dtype,
                              minval=-bound, maxval=bound)
    scale_base = _kaiming_uniform(ksb, (out_features, in_features),
                                  a=math.sqrt(5.0), fan_in=in_features,
                                  dtype=dtype)
    return dict(basis_w=basis_w, basis_b=basis_b, beta=beta,
                weights=weights, bias=bias, scale_base=scale_base)


# ------------------------------ pure-JAX reference ---------------------------
def kan_layer_reference(x, p):
    J, I = p["basis_w"].shape
    O = p["bias"].shape[0]
    z = x[..., None, :] * p["basis_w"] + p["basis_b"]            # (..., J, I)
    basis = jnp.exp(-p["beta"] * z * z)
    w3 = p["weights"].reshape(O, J, I)
    y = jnp.einsum('...ji,kji->...k', basis, w3) + p["bias"]
    y = y + jnp.cos(x) @ p["scale_base"].T
    return y


# ------------------------------------ main -----------------------------------
if __name__ == "__main__":
    in_features, out_features, num_basis = 8, 16, 8
    batch = 64

    key = jax.random.PRNGKey(0)
    kparams, kx = jax.random.split(key)
    params = make_kan_params(kparams, in_features, out_features, num_basis)

    x = jax.random.normal(kx, (batch, in_features), jnp.float32)

    y = kan_layer_forward(x,
                          params["basis_w"], params["basis_b"],
                          params["weights"], params["bias"],
                          params["scale_base"], params["beta"],
                          tb=256)
    y = jax.block_until_ready(y)

    y_ref = kan_layer_reference(x, params)
    assert y.shape == (batch, out_features)
    max_err = jnp.max(jnp.abs(y - y_ref))
    assert jnp.allclose(y, y_ref, atol=1e-3, rtol=1e-3), f"max err {max_err}"
    print("KERNEL_OK")
</pallas_src>

<mosaic_0001>
module attributes {stable_mosaic.version = 11 : i64} {
  func.func @_kan_kernel(%arg0: i32, %arg1: memref<64x128xf32, #tpu.memory_space<vmem>>, %arg2: memref<1x128xf32, #tpu.memory_space<vmem>>, %arg3: memref<1x128xf32, #tpu.memory_space<vmem>>, %arg4: memref<128x128xf32, #tpu.memory_space<vmem>>, %arg5: memref<64x128xf32, #tpu.memory_space<vmem>>) attributes {dimension_semantics = [#tpu.dimension_semantics<parallel>], iteration_bounds = array<i64: 1>, scalar_prefetch = 0 : i64, scratch_operands = 0 : i64, tpu.core_type = #tpu.core_type<tc>, window_params = [{transform_indices = @transform_0, window_bounds = array<i64: 64, 128>}, {pipeline_mode = #tpu.pipeline_mode<synchronous>, transform_indices = @transform_1, window_bounds = array<i64: 1, 128>}, {pipeline_mode = #tpu.pipeline_mode<synchronous>, transform_indices = @transform_2, window_bounds = array<i64: 1, 128>}, {pipeline_mode = #tpu.pipeline_mode<synchronous>, transform_indices = @transform_3, window_bounds = array<i64: 128, 128>}, {transform_indices = @transform_4, window_bounds = array<i64: 64, 128>}]} {
    %c0 = arith.constant 0 : index
    %c0_0 = arith.constant 0 : index
    %0 = vector.load %arg1[%c0, %c0_0] : memref<64x128xf32, #tpu.memory_space<vmem>>, vector<64x128xf32>
    %c0_1 = arith.constant 0 : index
    %c0_2 = arith.constant 0 : index
    %1 = vector.load %arg2[%c0_1, %c0_2] : memref<1x128xf32, #tpu.memory_space<vmem>>, vector<1x128xf32>
    %2 = vector.broadcast %1 : vector<1x128xf32> to vector<64x128xf32>
    %3 = arith.mulf %0, %2 : vector<64x128xf32>
    %c0_3 = arith.constant 0 : index
    %c0_4 = arith.constant 0 : index
    %4 = vector.load %arg3[%c0_3, %c0_4] : memref<1x128xf32, #tpu.memory_space<vmem>>, vector<1x128xf32>
    %5 = vector.broadcast %4 : vector<1x128xf32> to vector<64x128xf32>
    %6 = arith.addf %3, %5 : vector<64x128xf32>
    %cst = arith.constant -7.11111116 : f32
    %7 = vector.broadcast %cst : f32 to vector<64x128xf32>
    %8 = arith.mulf %7, %6 : vector<64x128xf32>
    %9 = arith.mulf %8, %6 : vector<64x128xf32>
    %10 = math.exp %9 : vector<64x128xf32>
    %11 = tpu.iota {dimensions = array<i32: 1>} : vector<64x128xi32>
    %c64_i32 = arith.constant 64 : i32
    %12 = vector.broadcast %c64_i32 : i32 to vector<64x128xi32>
    %13 = arith.cmpi slt, %11, %12 : vector<64x128xi32>
    %c72_i32 = arith.constant 72 : i32
    %14 = vector.broadcast %c72_i32 : i32 to vector<64x128xi32>
    %15 = arith.cmpi slt, %11, %14 : vector<64x128xi32>
    %16 = math.cos %0 : vector<64x128xf32>
    %c73_i32 = arith.constant 73 : i32
    %17 = vector.broadcast %c73_i32 : i32 to vector<64x128xi32>
    %18 = arith.cmpi slt, %11, %17 : vector<64x128xi32>
    %cst_5 = arith.constant 1.000000e+00 : f32
    %19 = vector.broadcast %cst_5 : f32 to vector<64x128xf32>
    %cst_6 = arith.constant 0.000000e+00 : f32
    %20 = vector.broadcast %cst_6 : f32 to vector<64x128xf32>
    %21 = arith.select %18, %19, %20 : vector<64x128xi1>, vector<64x128xf32>
    %22 = arith.select %15, %16, %21 : vector<64x128xi1>, vector<64x128xf32>
    %23 = arith.select %13, %10, %22 : vector<64x128xi1>, vector<64x128xf32>
    %c0_7 = arith.constant 0 : index
    %c0_8 = arith.constant 0 : index
    %24 = vector.load %arg4[%c0_7, %c0_8] : memref<128x128xf32, #tpu.memory_space<vmem>>, vector<128x128xf32>
    %cst_9 = arith.constant dense<0.000000e+00> : vector<64x128xf32>
    %25 = tpu.matmul %23, %24, %cst_9 {dimension_numbers = #tpu.dot_dimension_numbers<[1], [0], [0], [1], [0, 0, 1, 1], [], []>} : vector<64x128xf32>, vector<128x128xf32>, vector<64x128xf32> -> vector<64x128xf32>
    %c0_10 = arith.constant 0 : index
    %c0_11 = arith.constant 0 : index
    %26 = vector.load %arg5[%c0_10, %c0_11] : memref<64x128xf32, #tpu.memory_space<vmem>>, vector<64x128xf32>
    tpu.vector_store %arg5[%c0_10, %c0_11], %25 {strides = array<i32>} : memref<64x128xf32, #tpu.memory_space<vmem>>, vector<64x128xf32>,
    return
  }
  func.func @transform_0(%arg0: i32) -> (i32, i32) {
    %c0_i32 = arith.constant 0 : i32
    %c0_i32_0 = arith.constant 0 : i32
    return %arg0, %c0_i32 : i32, i32
  }
  func.func @transform_1(%arg0: i32) -> (i32, i32) {
    %c0_i32 = arith.constant 0 : i32
    %c0_i32_0 = arith.constant 0 : i32
    %c0_i32_1 = arith.constant 0 : i32
    return %c0_i32, %c0_i32_0 : i32, i32
  }
  func.func @transform_2(%arg0: i32) -> (i32, i32) {
    %c0_i32 = arith.constant 0 : i32
    %c0_i32_0 = arith.constant 0 : i32
    %c0_i32_1 = arith.constant 0 : i32
    return %c0_i32, %c0_i32_0 : i32, i32
  }
  func.func @transform_3(%arg0: i32) -> (i32, i32) {
    %c0_i32 = arith.constant 0 : i32
    %c0_i32_0 = arith.constant 0 : i32
    %c0_i32_1 = arith.constant 0 : i32
    return %c0_i32, %c0_i32_0 : i32, i32
  }
  func.func @transform_4(%arg0: i32) -> (i32, i32) {
    %c0_i32 = arith.constant 0 : i32
    %c0_i32_0 = arith.constant 0 : i32
    return %arg0, %c0_i32 : i32, i32
  }
}

</mosaic_0001>

<llo_original>
// kernel: tpu_custom_call.1
$region0: #{tpu_custom_call.1}
  #allocation0 [shape = 'u32[]', space=smem, size = 0x4, offset = 0x4, fixed_abs, tag = 'smem constant byte address 0x4 - core index']
  #allocation1 [shape = 'u32[144,128]{1,0:T(1,128)}', space=vmem, size = 0x12000, scoped, tag = 'internal scratch']
  %s0 = inlined_call_operand.hbm [shape: f32[64,128], index: 0, kind: input, shape index: {}]
  %s1 = inlined_call_operand.vmem [shape: f32[1,128], index: 1, kind: input, shape index: {}]
  %s2 = inlined_call_operand.vmem [shape: f32[1,128], index: 2, kind: input, shape index: {}]
  %s3 = inlined_call_operand.hbm [shape: f32[128,128], index: 3, kind: input, shape index: {}]
  %s4 = inlined_call_operand.hbm [shape: f32[64,128], index: 4, kind: output, shape index: {}]
  %s5 = sld [smem:[#allocation0]]
  $region34: #{tpu_custom_call.1} parent=0
    _
  %s7 = ssub.s32 1, %s5
  %s8 = scalar_select 0, %s7, %s5
  $region1: #{tpu_custom_call.1} parent=0
    #allocation2 [shape = 'u8[32768]{0}', space=vmem, size = 0x8000, scoped, tag = 'input window, operand 0, single buffered']
    #allocation3 [shape = 's32[1]{0}', space=sflag, size = 0x4, scoped, tag = 'scoped memory for tpu_custom_call.1']
    #allocation4 [shape = 's32[1]{0}', space=sflag, size = 0x4, scoped, tag = 'scoped memory for tpu_custom_call.1']
    #allocation5 [shape = 'u8[65536]{0}', space=vmem, size = 0x10000, scoped, tag = 'input window, operand 3, single buffered']
    #allocation6 [shape = 's32[1]{0}', space=sflag, size = 0x4, scoped, tag = 'scoped memory for tpu_custom_call.1']
    #allocation7 [shape = 'u8[32768]{0}', space=vmem, size = 0x8000, scoped, tag = 'output window, operand 0, single buffered']
    %9 = vsyncpa [#allocation3], 0
    %10 = vsyncpa [#allocation6], 0
    %11 = vsyncpa [#allocation4], 0
    // Predicated region
    $region2: #{tpu_custom_call.1} parent=1 // pred_check
      _
    $region3: #{tpu_custom_call.1} parent=1 // pred_check_branch
      %13 = sbr.rel (0) target = $region5
    $region4: #{tpu_custom_call.1} parent=1 // pred_region
      %s15 = ssub.s32 1024, 1024
      %16 = vsyncadd [#allocation3], %s15
      %s17 = sshll.u32 [#allocation2], 4
      %s18 = int_to_ptr.vmem [resolvable:$true] %s17
      %23 = dma.hbm_to_vmem [thread:$0]  %s0, 1024, %s18, [#allocation3], 128, 128, 8
    $region5: #{tpu_custom_call.1} parent=1 // pred_fallthru
      _
    // Predicated region
    $region6: #{tpu_custom_call.1} parent=1 // pred_check
      _
    $region7: #{tpu_custom_call.1} parent=1 // pred_check_branch
      %25 = sbr.rel (0) target = $region9
    $region8: #{tpu_custom_call.1} parent=1 // pred_region
      _
    $region9: #{tpu_custom_call.1} parent=1 // pred_fallthru
      _
    // Predicated region
    $region10: #{tpu_custom_call.1} parent=1 // pred_check
      _
    $region11: #{tpu_custom_call.1} parent=1 // pred_check_branch
      %27 = sbr.rel (0) target = $region13
    $region12: #{tpu_custom_call.1} parent=1 // pred_region
      _
    $region13: #{tpu_custom_call.1} parent=1 // pred_fallthru
      _
    // Predicated region
    $region14: #{tpu_custom_call.1} parent=1 // pred_check
      _
    $region15: #{tpu_custom_call.1} parent=1 // pred_check_branch
      %29 = sbr.rel (0) target = $region17
    $region16: #{tpu_custom_call.1} parent=1 // pred_region
      %s31 = ssub.s32 2048, 2048
      %32 = vsyncadd [#allocation6], %s31
      %s33 = sshll.u32 [#allocation5], 4
      %s34 = int_to_ptr.vmem [resolvable:$true] %s33
      %39 = dma.hbm_to_vmem [thread:$0]  %s3, 2048, %s34, [#allocation6], 128, 128, 8
    $region17: #{tpu_custom_call.1} parent=1 // pred_fallthru
      _
    // Predicated region
    $region18: #{tpu_custom_call.1} parent=1 // pred_check
      _
    $region19: #{tpu_custom_call.1} parent=1 // pred_check_branch
      %41 = sbr.rel (0) target = $region21
    $region20: #{tpu_custom_call.1} parent=1 // pred_region
      %42 = dma.done [#allocation3], 1024
    $region21: #{tpu_custom_call.1} parent=1 // pred_fallthru
      _
    // Predicated region
    $region22: #{tpu_custom_call.1} parent=1 // pred_check
      _
    $region23: #{tpu_custom_call.1} parent=1 // pred_check_branch
      %44 = sbr.rel (0) target = $region25
    $region24: #{tpu_custom_call.1} parent=1 // pred_region
      %45 = dma.done [#allocation6], 2048
    $region25: #{tpu_custom_call.1} parent=1 // pred_fallthru
      _
    %v46 = vld [vmem:[#allocation2] sm:$0xff]
    %v47 = vld [vmem:[#allocation2 + $0x8] sm:$0xff]
    %v48 = vld [vmem:[#allocation2 + $0x10] sm:$0xff]
    %v49 = vld [vmem:[#allocation2 + $0x18] sm:$0xff]
    %v50 = vld [vmem:[#allocation2 + $0x20] sm:$0xff]
    %v51 = vld [vmem:[#allocation2 + $0x28] sm:$0xff]
    %v52 = vld [vmem:[#allocation2 + $0x30] sm:$0xff]
    %v53 = vld [vmem:[#allocation2 + $0x38] sm:$0xff]
    %v54 = vld [vmem:[%s1] sm:$0x1]
    %v56 = vlaneseq
    %v57 = vshrl.u32 %v56, 7
    %v58 = vsub.s32 0, %v57
    %v59 = vrot.slane %v54, %v58
    %v61 = vmul.f32 %v46, %v59
    %v62 = vmul.f32 %v47, %v59
    %v63 = vmul.f32 %v48, %v59
    %v64 = vmul.f32 %v49, %v59
    %v65 = vmul.f32 %v50, %v59
    %v66 = vmul.f32 %v51, %v59
    %v67 = vmul.f32 %v52, %v59
    %v68 = vmul.f32 %v53, %v59
    %v69 = vld [vmem:[%s2] sm:$0x1]
    %v71 = vlaneseq
    %v72 = vshrl.u32 %v71, 7
    %v73 = vsub.s32 0, %v72
    %v74 = vrot.slane %v69, %v73
    %v76 = vadd.f32 %v61, %v74
    %v77 = vadd.f32 %v62, %v74
    %v78 = vadd.f32 %v63, %v74
    %v79 = vadd.f32 %v64, %v74
    %v80 = vadd.f32 %v65, %v74
    %v81 = vadd.f32 %v66, %v74
    %v82 = vadd.f32 %v67, %v74
    %v83 = vadd.f32 %v68, %v74
    %v84 = vmul.f32 %v76, -7.111111
    %v85 = vmul.f32 %v77, -7.111111
    %v86 = vmul.f32 %v78, -7.111111
    %v87 = vmul.f32 %v79, -7.111111
    %v88 = vmul.f32 %v80, -7.111111
    %v89 = vmul.f32 %v81, -7.111111
    %v90 = vmul.f32 %v82, -7.111111
    %v91 = vmul.f32 %v83, -7.111111
    %v92 = vmul.f32 %v84, %v76
    %v93 = vmul.f32 %v85, %v77
    %v94 = vmul.f32 %v86, %v78
    %v95 = vmul.f32 %v87, %v79
    %v96 = vmul.f32 %v88, %v80
    %v97 = vmul.f32 %v89, %v81
    %v98 = vmul.f32 %v90, %v82
    %v99 = vmul.f32 %v91, %v83
    %v100 = vmul.f32 %v92, 1.442695
    %v101 = vpow.pop %v100
    %v102 = vmul.f32 %v93, 1.442695
    %v103 = vpow.pop %v102
    %v104 = vmul.f32 %v94, 1.442695
    %v105 = vpow.pop %v104
    %v106 = vmul.f32 %v95, 1.442695
    %v107 = vpow.pop %v106
    %v108 = vmul.f32 %v96, 1.442695
    %v109 = vpow.pop %v108
    %v110 = vmul.f32 %v97, 1.442695
    %v111 = vpow.pop %v110
    %v112 = vmul.f32 %v98, 1.442695
    %v113 = vpow.pop %v112
    %v114 = vmul.f32 %v99, 1.442695
    %v115 = vpow.pop %v114
    %v116 = vlaneseq
    %v117 = vand.u32 %v116, 127
    %vm118 = vcmp.lt.s32.totalorder %v117, 64
    %vm119 = vcmp.lt.s32.totalorder %v117, 72
    %v120 = vand.u32 2147483647, %v46
    %vm121 = vcmp.le.f32.partialorder %v120, 0.7853982
    %vm122 = vcmp.lt.s32.totalorder %v46, 0
    %v123 = vand.u32 %v46, 2139095040
    %v124 = vshrl.u32 %v123, 23
    %v125 = vsub.s32 %v124, 127
    %v126 = vand.u32 2147483647, %v46
    %v127 = vand.u32 %v126, 8388607
    %v128 = vor.u32 %v127, 8388608
    %v129 = vsub.s32 0, %v128
    %v130 = vadd.s32 %v125, 1
    %vm131 = vcmp.gt.s32.totalorder %v130, 0
    %v132 = vsel %vm131, %v130, 0
    %v133 = vshrl.u32 %v132, 5
    %v134 = vand.u32 %v132, 31
    %v135 = vsub.s32 32, %v134
    %v136 = vshrl.u32 683565275, %v135
    %v137 = vshll.u32 683565275, %v134
    %v138 = vshrl.u32 2475754826, %v135
    %v139 = vor.u32 %v137, %v138
    %v140 = vshll.u32 2475754826, %v134
    %v141 = vshrl.u32 2131351028, %v135
    %v142 = vor.u32 %v140, %v141
    %v143 = vshll.u32 2131351028, %v134
    %v144 = vshrl.u32 2102212464, %v135
    %v145 = vor.u32 %v143, %v144
    %v146 = vshll.u32 2102212464, %v134
    %v147 = vshrl.u32 920167782, %v135
    %v148 = vor.u32 %v146, %v147
    %v149 = vshll.u32 920167782, %v134
    %v150 = vshrl.u32 1326507024, %v135
    %v151 = vor.u32 %v149, %v150
    %vm152 = vcmp.lt.s32.totalorder %v133, 1
    %vm153 = vcmp.lt.s32.totalorder %v133, 2
    %vm154 = vcmp.lt.s32.totalorder %v133, 3
    %vm155 = vcmp.lt.s32.totalorder %v133, 4
    %v156 = vsel %vm152, %v136, %v139
    %v157 = vsel %vm155, %v145, 2102212464
    %v158 = vsel %vm154, %v142, %v157
    %v159 = vsel %vm153, %v156, %v158
    %v160 = vsel %vm152, %v139, %v142
    %v161 = vsel %vm155, %v148, 920167782
    %v162 = vsel %vm154, %v145, %v161
    %v163 = vsel %vm153, %v160, %v162
    %v164 = vsel %vm152, %v142, %v145
    %v165 = vsel %vm155, %v151, 1326507024
    %v166 = vsel %vm154, %v148, %v165
    %v167 = vsel %vm153, %v164, %v166
    %v168 = vshll.u32 %v128, 8
    %v169 = vmul.u32.u64.compose %v168, %v167
    %v170 = vextract.low.u32 %v169
    %v171 = vextract.high.u32 %v169
    %v172 = vmul.u32.u64.compose %v168, %v163
    %v173 = vextract.low.u32 %v172
    %v174 = vextract.high.u32 %v172
    %v175 = vmul.u32 %v168, %v159
    %v176 = vadd.s32 %v171, %v173
    %vm177 = vc.u32 %v171, %v173
    %v178 = vadd.s32 %v174, 1
    %v179 = vsel %vm177, %v178, %v174
    %v180 = vadd.s32 %v175, %v179
    %v181 = vadd.s32 %v180, 536870912
    %v182 = vshrl.u32 %v181, 30
    %v183 = vshll.u32 %v182, 30
    %v184 = vsub.s32 %v180, %v183
    %vm185 = vcmp.lt.s32.totalorder %v184, 0
    %v186 = vsub.s32 0, %v184
    %v187 = vsel %vm185, %v186, %v184
    %v188 = vclz %v187
    %v189 = vsub.s32 %v188, 2
    %vm190 = vcmp.gt.s32.totalorder 0, %v189
    %v191 = vsel %vm190, 0, %v189
    %v192 = vsub.s32 32, %v191
    %v193 = vshll.u32 %v184, %v191
    %v194 = vshrl.u32 %v176, %v192
    %v195 = vor.u32 %v193, %v194
    %v196 = vsub.s32 4294967266, %v191
    %v197 = vadd.s32 %v196, 127
    %v198 = vshll.u32 %v197, 23
    %v199 = vor.u32 4788187, %v198
    %v200 = vand.u32 2147483647, %v199
    %v202 = vcvt.s32.f32 %v195
    %v203 = vmul.f32 %v202, %v200
    %v204 = vxor.u32 %v203, 2147483648
    %v205 = vsel %vm122, %v204, %v203
    %v206 = vsub.s32 4, %v182
    %v207 = vsel %vm122, %v206, %v182
    %v208 = vsel %vm121, %v46, %v205
    %v209 = vsel %vm121, 0, %v207
    %v210 = vcosq.f32.pop %v208
    %v211 = vsinq.f32.pop %v208
    %vm212 = vweird.f32 %v46
    %v213 = vand.u32 %v209, 3
    %vm214 = vcmp.lt.s32.totalorder %v213, 2
    %vm215 = vcmp.eq.s32.totalorder %v213, 0
    %v216 = vxor.u32 %v211, 2147483648
    %v217 = vsel %vm215, %v210, %v216
    %vm218 = vcmp.eq.s32.totalorder %v213, 2
    %v219 = vxor.u32 %v210, 2147483648
    %v220 = vsel %vm218, %v219, %v211
    %v221 = vsel %vm214, %v217, %v220
    %v222 = vsel %vm212, nan, %v221
    %v223 = vand.u32 2147483647, %v47
    %vm224 = vcmp.le.f32.partialorder %v223, 0.7853982
    %vm225 = vcmp.lt.s32.totalorder %v47, 0
    %v226 = vand.u32 %v47, 2139095040
    %v227 = vshrl.u32 %v226, 23
    %v228 = vsub.s32 %v227, 127
    %v229 = vand.u32 2147483647, %v47
    %v230 = vand.u32 %v229, 8388607
    %v231 = vor.u32 %v230, 8388608
    %v232 = vsub.s32 0, %v231
    %v233 = vadd.s32 %v228, 1
    %vm234 = vcmp.gt.s32.totalorder %v233, 0
    %v235 = vsel %vm234, %v233, 0
    %v236 = vshrl.u32 %v235, 5
    %v237 = vand.u32 %v235, 31
    %v238 = vsub.s32 32, %v237
    %v239 = vshrl.u32 683565275, %v238
    %v240 = vshll.u32 683565275, %v237
    %v241 = vshrl.u32 2475754826, %v238
    %v242 = vor.u32 %v240, %v241
    %v243 = vshll.u32 2475754826, %v237
    %v244 = vshrl.u32 2131351028, %v238
    %v245 = vor.u32 %v243, %v244
    %v246 = vshll.u32 2131351028, %v237
    %v247 = vshrl.u32 2102212464, %v238
    %v248 = vor.u32 %v246, %v247
    %v249 = vshll.u32 2102212464, %v237
    %v250 = vshrl.u32 920167782, %v238
    %v251 = vor.u32 %v249, %v250
    %v252 = vshll.u32 920167782, %v237
    %v253 = vshrl.u32 1326507024, %v238
    %v254 = vor.u32 %v252, %v253
    %vm255 = vcmp.lt.s32.totalorder %v236, 1
    %vm256 = vcmp.lt.s32.totalorder %v236, 2
    %vm257 = vcmp.lt.s32.totalorder %v236, 3
    %vm258 = vcmp.lt.s32.totalorder %v236, 4
    %v259 = vsel %vm255, %v239, %v242
    %v260 = vsel %vm258, %v248, 2102212464
    %v261 = vsel %vm257, %v245, %v260
    %v262 = vsel %vm256, %v259, %v261
    %v263 = vsel %vm255, %v242, %v245
    %v264 = vsel %vm258, %v251, 920167782
    %v265 = vsel %vm257, %v248, %v264
    %v266 = vsel %vm256, %v263, %v265
    %v267 = vsel %vm255, %v245, %v248
    %v268 = vsel %vm258, %v254, 1326507024
    %v269 = vsel %vm257, %v251, %v268
    %v270 = vsel %vm256, %v267, %v269
    %v271 = vshll.u32 %v231, 8
    %v272 = vmul.u32.u64.compose %v271, %v270
    %v273 = vextract.low.u32 %v272
    %v274 = vextract.high.u32 %v272
    %v275 = vmul.u32.u64.compose %v271, %v266
    %v276 = vextract.low.u32 %v275
    %v277 = vextract.high.u32 %v275
    %v278 = vmul.u32 %v271, %v262
    %v279 = vadd.s32 %v274, %v276
    %vm280 = vc.u32 %v274, %v276
    %v281 = vadd.s32 %v277, 1
    %v282 = vsel %vm280, %v281, %v277
    %v283 = vadd.s32 %v278, %v282
    %v284 = vadd.s32 %v283, 536870912
    %v285 = vshrl.u32 %v284, 30
    %v286 = vshll.u32 %v285, 30
    %v287 = vsub.s32 %v283, %v286
    %vm288 = vcmp.lt.s32.totalorder %v287, 0
    %v289 = vsub.s32 0, %v287
    %v290 = vsel %vm288, %v289, %v287
    %v291 = vclz %v290
    %v292 = vsub.s32 %v291, 2
    %vm293 = vcmp.gt.s32.totalorder 0, %v292
    %v294 = vsel %vm293, 0, %v292
    %v295 = vsub.s32 32, %v294
    %v296 = vshll.u32 %v287, %v294
    %v297 = vshrl.u32 %v279, %v295
    %v298 = vor.u32 %v296, %v297
    %v299 = vsub.s32 4294967266, %v294
    %v300 = vadd.s32 %v299, 127
    %v301 = vshll.u32 %v300, 23
    %v302 = vor.u32 4788187, %v301
    %v303 = vand.u32 2147483647, %v302
    %v305 = vcvt.s32.f32 %v298
    %v306 = vmul.f32 %v305, %v303
    %v307 = vxor.u32 %v306, 2147483648
    %v308 = vsel %vm225, %v307, %v306
    %v309 = vsub.s32 4, %v285
    %v310 = vsel %vm225, %v309, %v285
    %v311 = vsel %vm224, %v47, %v308
    %v312 = vsel %vm224, 0, %v310
    %v313 = vcosq.f32.pop %v311
    %v314 = vsinq.f32.pop %v311
    %vm315 = vweird.f32 %v47
    %v316 = vand.u32 %v312, 3
    %vm317 = vcmp.lt.s32.totalorder %v316, 2
    %vm318 = vcmp.eq.s32.totalorder %v316, 0
    %v319 = vxor.u32 %v314, 2147483648
    %v320 = vsel %vm318, %v313, %v319
    %vm321 = vcmp.eq.s32.totalorder %v316, 2
    %v322 = vxor.u32 %v313, 2147483648
    %v323 = vsel %vm321, %v322, %v314
    %v324 = vsel %vm317, %v320, %v323
    %v325 = vsel %vm315, nan, %v324
    %v326 = vand.u32 2147483647, %v48
    %vm327 = vcmp.le.f32.partialorder %v326, 0.7853982
    %vm328 = vcmp.lt.s32.totalorder %v48, 0
    %v329 = vand.u32 %v48, 2139095040
    %v330 = vshrl.u32 %v329, 23
    %v331 = vsub.s32 %v330, 127
    %v332 = vand.u32 2147483647, %v48
    %v333 = vand.u32 %v332, 8388607
    %v334 = vor.u32 %v333, 8388608
    %v335 = vsub.s32 0, %v334
    %v336 = vadd.s32 %v331, 1
    %vm337 = vcmp.gt.s32.totalorder %v336, 0
    %v338 = vsel %vm337, %v336, 0
    %v339 = vshrl.u32 %v338, 5
    %v340 = vand.u32 %v338, 31
    %v341 = vsub.s32 32, %v340
    %v342 = vshrl.u32 683565275, %v341
    %v343 = vshll.u32 683565275, %v340
    %v344 = vshrl.u32 2475754826, %v341
    %v345 = vor.u32 %v343, %v344
    %v346 = vshll.u32 2475754826, %v340
    %v347 = vshrl.u32 2131351028, %v341
    %v348 = vor.u32 %v346, %v347
    %v349 = vshll.u32 2131351028, %v340
    %v350 = vshrl.u32 2102212464, %v341
    %v351 = vor.u32 %v349, %v350
    %v352 = vshll.u32 2102212464, %v340
    %v353 = vshrl.u32 920167782, %v341
    %v354 = vor.u32 %v352, %v353
    %v355 = vshll.u32 920167782, %v340
    %v356 = vshrl.u32 1326507024, %v341
    %v357 = vor.u32 %v355, %v356
    %vm358 = vcmp.lt.s32.totalorder %v339, 1
    %vm359 = vcmp.lt.s32.totalorder %v339, 2
    %vm360 = vcmp.lt.s32.totalorder %v339, 3
    %vm361 = vcmp.lt.s32.totalorder %v339, 4
    %v362 = vsel %vm358, %v342, %v345
    %v363 = vsel %vm361, %v351, 2102212464
    %v364 = vsel %vm360, %v348, %v363
    %v365 = vsel %vm359, %v362, %v364
    %v366 = vsel %vm358, %v345, %v348
    %v367 = vsel %vm361, %v354, 920167782
    %v368 = vsel %vm360, %v351, %v367
    %v369 = vsel %vm359, %v366, %v368
    %v370 = vsel %vm358, %v348, %v351
    %v371 = vsel %vm361, %v357, 1326507024
    %v372 = vsel %vm360, %v354, %v371
    %v373 = vsel %vm359, %v370, %v372
    %v374 = vshll.u32 %v334, 8
    %v375 = vmul.u32.u64.compose %v374, %v373
    %v376 = vextract.low.u32 %v375
    %v377 = vextract.high.u32 %v375
    %v378 = vmul.u32.u64.compose %v374, %v369
    %v379 = vextract.low.u32 %v378
    %v380 = vextract.high.u32 %v378
    %v381 = vmul.u32 %v374, %v365
    %v382 = vadd.s32 %v377, %v379
    %vm383 = vc.u32 %v377, %v379
    %v384 = vadd.s32 %v380, 1
    %v385 = vsel %vm383, %v384, %v380
    %v386 = vadd.s32 %v381, %v385
    %v387 = vadd.s32 %v386, 536870912
    %v388 = vshrl.u32 %v387, 30
    %v389 = vshll.u32 %v388, 30
    %v390 = vsub.s32 %v386, %v389
    %vm391 = vcmp.lt.s32.totalorder %v390, 0
    %v392 = vsub.s32 0, %v390
    %v393 = vsel %vm391, %v392, %v390
    %v394 = vclz %v393
    %v395 = vsub.s32 %v394, 2
    %vm396 = vcmp.gt.s32.totalorder 0, %v395
    %v397 = vsel %vm396, 0, %v395
    %v398 = vsub.s32 32, %v397
    %v399 = vshll.u32 %v390, %v397
    %v400 = vshrl.u32 %v382, %v398
    %v401 = vor.u32 %v399, %v400
    %v402 = vsub.s32 4294967266, %v397
    %v403 = vadd.s32 %v402, 127
    %v404 = vshll.u32 %v403, 23
    %v405 = vor.u32 4788187, %v404
    %v406 = vand.u32 2147483647, %v405
    %v408 = vcvt.s32.f32 %v401
    %v409 = vmul.f32 %v408, %v406
    %v410 = vxor.u32 %v409, 2147483648
    %v411 = vsel %vm328, %v410, %v409
    %v412 = vsub.s32 4, %v388
    %v413 = vsel %vm328, %v412, %v388
    %v414 = vsel %vm327, %v48, %v411
    %v415 = vsel %vm327, 0, %v413
    %v416 = vcosq.f32.pop %v414
    %v417 = vsinq.f32.pop %v414
    %vm418 = vweird.f32 %v48
    %v419 = vand.u32 %v415, 3
    %vm420 = vcmp.lt.s32.totalorder %v419, 2
    %vm421 = vcmp.eq.s32.totalorder %v419, 0
    %v422 = vxor.u32 %v417, 2147483648
    %v423 = vsel %vm421, %v416, %v422
    %vm424 = vcmp.eq.s32.totalorder %v419, 2
    %v425 = vxor.u32 %v416, 2147483648
    %v426 = vsel %vm424, %v425, %v417
    %v427 = vsel %vm420, %v423, %v426
    %v428 = vsel %vm418, nan, %v427
    %v429 = vand.u32 2147483647, %v49
    %vm430 = vcmp.le.f32.partialorder %v429, 0.7853982
    %vm431 = vcmp.lt.s32.totalorder %v49, 0
    %v432 = vand.u32 %v49, 2139095040
    %v433 = vshrl.u32 %v432, 23
    %v434 = vsub.s32 %v433, 127
    %v435 = vand.u32 2147483647, %v49
    %v436 = vand.u32 %v435, 8388607
    %v437 = vor.u32 %v436, 8388608
    %v438 = vsub.s32 0, %v437
    %v439 = vadd.s32 %v434, 1
    %vm440 = vcmp.gt.s32.totalorder %v439, 0
    %v441 = vsel %vm440, %v439, 0
    %v442 = vshrl.u32 %v441, 5
    %v443 = vand.u32 %v441, 31
    %v444 = vsub.s32 32, %v443
    %v445 = vshrl.u32 683565275, %v444
    %v446 = vshll.u32 683565275, %v443
    %v447 = vshrl.u32 2475754826, %v444
    %v448 = vor.u32 %v446, %v447
    %v449 = vshll.u32 2475754826, %v443
    %v450 = vshrl.u32 2131351028, %v444
    %v451 = vor.u32 %v449, %v450
    %v452 = vshll.u32 2131351028, %v443
    %v453 = vshrl.u32 2102212464, %v444
    %v454 = vor.u32 %v452, %v453
    %v455 = vshll.u32 2102212464, %v443
    %v456 = vshrl.u32 920167782, %v444
    %v457 = vor.u32 %v455, %v456
    %v458 = vshll.u32 920167782, %v443
    %v459 = vshrl.u32 1326507024, %v444
    %v460 = vor.u32 %v458, %v459
    %vm461 = vcmp.lt.s32.totalorder %v442, 1
    %vm462 = vcmp.lt.s32.totalorder %v442, 2
    %vm463 = vcmp.lt.s32.totalorder %v442, 3
    %vm464 = vcmp.lt.s32.totalorder %v442, 4
    %v465 = vsel %vm461, %v445, %v448
    %v466 = vsel %vm464, %v454, 2102212464
    %v467 = vsel %vm463, %v451, %v466
    %v468 = vsel %vm462, %v465, %v467
    %v469 = vsel %vm461, %v448, %v451
    %v470 = vsel %vm464, %v457, 920167782
    %v471 = vsel %vm463, %v454, %v470
    %v472 = vsel %vm462, %v469, %v471
    %v473 = vsel %vm461, %v451, %v454
    %v474 = vsel %vm464, %v460, 1326507024
    %v475 = vsel %vm463, %v457, %v474
    %v476 = vsel %vm462, %v473, %v475
    %v477 = vshll.u32 %v437, 8
    %v478 = vmul.u32.u64.compose %v477, %v476
    %v479 = vextract.low.u32 %v478
    %v480 = vextract.high.u32 %v478
    %v481 = vmul.u32.u64.compose %v477, %v472
    %v482 = vextract.low.u32 %v481
    %v483 = vextract.high.u32 %v481
    %v484 = vmul.u32 %v477, %v468
    %v485 = vadd.s32 %v480, %v482
    %vm486 = vc.u32 %v480, %v482
    %v487 = vadd.s32 %v483, 1
    %v488 = vsel %vm486, %v487, %v483
    %v489 = vadd.s32 %v484, %v488
    %v490 = vadd.s32 %v489, 536870912
    %v491 = vshrl.u32 %v490, 30
    %v492 = vshll.u32 %v491, 30
    %v493 = vsub.s32 %v489, %v492
    %vm494 = vcmp.lt.s32.totalorder %v493, 0
    %v495 = vsub.s32 0, %v493
    %v496 = vsel %vm494, %v495, %v493
    %v497 = vclz %v496
    %v498 = vsub.s32 %v497, 2
    %vm499 = vcmp.gt.s32.totalorder 0, %v498
    %v500 = vsel %vm499, 0, %v498
    %v501 = vsub.s32 32, %v500
    %v502 = vshll.u32 %v493, %v500
    %v503 = vshrl.u32 %v485, %v501
    %v504 = vor.u32 %v502, %v503
    %v505 = vsub.s32 4294967266, %v500
    %v506 = vadd.s32 %v505, 127
    %v507 = vshll.u32 %v506, 23
    %v508 = vor.u32 4788187, %v507
    %v509 = vand.u32 2147483647, %v508
    %v511 = vcvt.s32.f32 %v504
    %v512 = vmul.f32 %v511, %v509
    %v513 = vxor.u32 %v512, 2147483648
    %v514 = vsel %vm431, %v513, %v512
    %v515 = vsub.s32 4, %v491
    %v516 = vsel %vm431, %v515, %v491
    %v517 = vsel %vm430, %v49, %v514
    %v518 = vsel %vm430, 0, %v516
    %v519 = vcosq.f32.pop %v517
    %v520 = vsinq.f32.pop %v517
    %vm521 = vweird.f32 %v49
    %v522 = vand.u32 %v518, 3
    %vm523 = vcmp.lt.s32.totalorder %v522, 2
    %vm524 = vcmp.eq.s32.totalorder %v522, 0
    %v525 = vxor.u32 %v520, 2147483648
    %v526 = vsel %vm524, %v519, %v525
    %vm527 = vcmp.eq.s32.totalorder %v522, 2
    %v528 = vxor.u32 %v519, 2147483648
    %v529 = vsel %vm527, %v528, %v520
    %v530 = vsel %vm523, %v526, %v529
    %v531 = vsel %vm521, nan, %v530
    %v532 = vand.u32 2147483647, %v50
    %vm533 = vcmp.le.f32.partialorder %v532, 0.7853982
    %vm534 = vcmp.lt.s32.totalorder %v50, 0
    %v535 = vand.u32 %v50, 2139095040
    %v536 = vshrl.u32 %v535, 23
    %v537 = vsub.s32 %v536, 127
    %v538 = vand.u32 2147483647, %v50
    %v539 = vand.u32 %v538, 8388607
    %v540 = vor.u32 %v539, 8388608
    %v541 = vsub.s32 0, %v540
    %v542 = vadd.s32 %v537, 1
    %vm543 = vcmp.gt.s32.totalorder %v542, 0
    %v544 = vsel %vm543, %v542, 0
    %v545 = vshrl.u32 %v544, 5
    %v546 = vand.u32 %v544, 31
    %v547 = vsub.s32 32, %v546
    %v548 = vshrl.u32 683565275, %v547
    %v549 = vshll.u32 683565275, %v546
    %v550 = vshrl.u32 2475754826, %v547
    %v551 = vor.u32 %v549, %v550
    %v552 = vshll.u32 2475754826, %v546
    %v553 = vshrl.u32 2131351028, %v547
    %v554 = vor.u32 %v552, %v553
    %v555 = vshll.u32 2131351028, %v546
    %v556 = vshrl.u32 2102212464, %v547
    %v557 = vor.u32 %v555, %v556
    %v558 = vshll.u32 2102212464, %v546
    %v559 = vshrl.u32 920167782, %v547
    %v560 = vor.u32 %v558, %v559
    %v561 = vshll.u32 920167782, %v546
    %v562 = vshrl.u32 1326507024, %v547
    %v563 = vor.u32 %v561, %v562
    %vm564 = vcmp.lt.s32.totalorder %v545, 1
    %vm565 = vcmp.lt.s32.totalorder %v545, 2
    %vm566 = vcmp.lt.s32.totalorder %v545, 3
    %vm567 = vcmp.lt.s32.totalorder %v545, 4
    %v568 = vsel %vm564, %v548, %v551
    %v569 = vsel %vm567, %v557, 2102212464
    %v570 = vsel %vm566, %v554, %v569
    %v571 = vsel %vm565, %v568, %v570
    %v572 = vsel %vm564, %v551, %v554
    %v573 = vsel %vm567, %v560, 920167782
    %v574 = vsel %vm566, %v557, %v573
    %v575 = vsel %vm565, %v572, %v574
    %v576 = vsel %vm564, %v554, %v557
    %v577 = vsel %vm567, %v563, 1326507024
    %v578 = vsel %vm566, %v560, %v577
    %v579 = vsel %vm565, %v576, %v578
    %v580 = vshll.u32 %v540, 8
    %v581 = vmul.u32.u64.compose %v580, %v579
    %v582 = vextract.low.u32 %v581
    %v583 = vextract.high.u32 %v581
    %v584 = vmul.u32.u64.compose %v580, %v575
    %v585 = vextract.low.u32 %v584
    %v586 = vextract.high.u32 %v584
    %v587 = vmul.u32 %v580, %v571
    %v588 = vadd.s32 %v583, %v585
    %vm589 = vc.u32 %v583, %v585
    %v590 = vadd.s32 %v586, 1
    %v591 = vsel %vm589, %v590, %v586
    %v592 = vadd.s32 %v587, %v591
    %v593 = vadd.s32 %v592, 536870912
    %v594 = vshrl.u32 %v593, 30
    %v595 = vshll.u32 %v594, 30
    %v596 = vsub.s32 %v592, %v595
    %vm597 = vcmp.lt.s32.totalorder %v596, 0
    %v598 = vsub.s32 0, %v596
    %v599 = vsel %vm597, %v598, %v596
    %v600 = vclz %v599
    %v601 = vsub.s32 %v600, 2
    %vm602 = vcmp.gt.s32.totalorder 0, %v601
    %v603 = vsel %vm602, 0, %v601
    %v604 = vsub.s32 32, %v603
    %v605 = vshll.u32 %v596, %v603
    %v606 = vshrl.u32 %v588, %v604
    %v607 = vor.u32 %v605, %v606
    %v608 = vsub.s32 4294967266, %v603
    %v609 = vadd.s32 %v608, 127
    %v610 = vshll.u32 %v609, 23
    %v611 = vor.u32 4788187, %v610
    %v612 = vand.u32 2147483647, %v611
    %v614 = vcvt.s32.f32 %v607
    %v615 = vmul.f32 %v614, %v612
    %v616 = vxor.u32 %v615, 2147483648
    %v617 = vsel %vm534, %v616, %v615
    %v618 = vsub.s32 4, %v594
    %v619 = vsel %vm534, %v618, %v594
    %v620 = vsel %vm533, %v50, %v617
    %v621 = vsel %vm533, 0, %v619
    %v622 = vcosq.f32.pop %v620
    %v623 = vsinq.f32.pop %v620
    %vm624 = vweird.f32 %v50
    %v625 = vand.u32 %v621, 3
    %vm626 = vcmp.lt.s32.totalorder %v625, 2
    %vm627 = vcmp.eq.s32.totalorder %v625, 0
    %v628 = vxor.u32 %v623, 2147483648
    %v629 = vsel %vm627, %v622, %v628
    %vm630 = vcmp.eq.s32.totalorder %v625, 2
    %v631 = vxor.u32 %v622, 2147483648
    %v632 = vsel %vm630, %v631, %v623
    %v633 = vsel %vm626, %v629, %v632
    %v634 = vsel %vm624, nan, %v633
    %v635 = vand.u32 2147483647, %v51
    %vm636 = vcmp.le.f32.partialorder %v635, 0.7853982
    %vm637 = vcmp.lt.s32.totalorder %v51, 0
    %v638 = vand.u32 %v51, 2139095040
    %v639 = vshrl.u32 %v638, 23
    %v640 = vsub.s32 %v639, 127
    %v641 = vand.u32 2147483647, %v51
    %v642 = vand.u32 %v641, 8388607
    %v643 = vor.u32 %v642, 8388608
    %v644 = vsub.s32 0, %v643
    %v645 = vadd.s32 %v640, 1
    %vm646 = vcmp.gt.s32.totalorder %v645, 0
    %v647 = vsel %vm646, %v645, 0
    %v648 = vshrl.u32 %v647, 5
    %v649 = vand.u32 %v647, 31
    %v650 = vsub.s32 32, %v649
    %v651 = vshrl.u32 683565275, %v650
    %v652 = vshll.u32 683565275, %v649
    %v653 = vshrl.u32 2475754826, %v650
    %v654 = vor.u32 %v652, %v653
    %v655 = vshll.u32 2475754826, %v649
    %v656 = vshrl.u32 2131351028, %v650
    %v657 = vor.u32 %v655, %v656
    %v658 = vshll.u32 2131351028, %v649
    %v659 = vshrl.u32 2102212464, %v650
    %v660 = vor.u32 %v658, %v659
    %v661 = vshll.u32 2102212464, %v649
    %v662 = vshrl.u32 920167782, %v650
    %v663 = vor.u32 %v661, %v662
    %v664 = vshll.u32 920167782, %v649
    %v665 = vshrl.u32 1326507024, %v650
    %v666 = vor.u32 %v664, %v665
    %vm667 = vcmp.lt.s32.totalorder %v648, 1
    %vm668 = vcmp.lt.s32.totalorder %v648, 2
    %vm669 = vcmp.lt.s32.totalorder %v648, 3
    %vm670 = vcmp.lt.s32.totalorder %v648, 4
    %v671 = vsel %vm667, %v651, %v654
    %v672 = vsel %vm670, %v660, 2102212464
    %v673 = vsel %vm669, %v657, %v672
    %v674 = vsel %vm668, %v671, %v673
    %v675 = vsel %vm667, %v654, %v657
    %v676 = vsel %vm670, %v663, 920167782
    %v677 = vsel %vm669, %v660, %v676
    %v678 = vsel %vm668, %v675, %v677
    %v679 = vsel %vm667, %v657, %v660
    %v680 = vsel %vm670, %v666, 1326507024
    %v681 = vsel %vm669, %v663, %v680
    %v682 = vsel %vm668, %v679, %v681
    %v683 = vshll.u32 %v643, 8
    %v684 = vmul.u32.u64.compose %v683, %v682
    %v685 = vextract.low.u32 %v684
    %v686 = vextract.high.u32 %v684
    %v687 = vmul.u32.u64.compose %v683, %v678
    %v688 = vextract.low.u32 %v687
    %v689 = vextract.high.u32 %v687
    %v690 = vmul.u32 %v683, %v674
    %v691 = vadd.s32 %v686, %v688
    %vm692 = vc.u32 %v686, %v688
    %v693 = vadd.s32 %v689, 1
    %v694 = vsel %vm692, %v693, %v689
    %v695 = vadd.s32 %v690, %v694
    %v696 = vadd.s32 %v695, 536870912
    %v697 = vshrl.u32 %v696, 30
    %v698 = vshll.u32 %v697, 30
    %v699 = vsub.s32 %v695, %v698
    %vm700 = vcmp.lt.s32.totalorder %v699, 0
    %v701 = vsub.s32 0, %v699
    %v702 = vsel %vm700, %v701, %v699
    %v703 = vclz %v702
    %v704 = vsub.s32 %v703, 2
    %vm705 = vcmp.gt.s32.totalorder 0, %v704
    %v706 = vsel %vm705, 0, %v704
    %v707 = vsub.s32 32, %v706
    %v708 = vshll.u32 %v699, %v706
    %v709 = vshrl.u32 %v691, %v707
    %v710 = vor.u32 %v708, %v709
    %v711 = vsub.s32 4294967266, %v706
    %v712 = vadd.s32 %v711, 127
    %v713 = vshll.u32 %v712, 23
    %v714 = vor.u32 4788187, %v713
    %v715 = vand.u32 2147483647, %v714
    %v717 = vcvt.s32.f32 %v710
    %v718 = vmul.f32 %v717, %v715
    %v719 = vxor.u32 %v718, 2147483648
    %v720 = vsel %vm637, %v719, %v718
    %v721 = vsub.s32 4, %v697
    %v722 = vsel %vm637, %v721, %v697
    %v723 = vsel %vm636, %v51, %v720
    %v724 = vsel %vm636, 0, %v722
    %v725 = vcosq.f32.pop %v723
    %v726 = vsinq.f32.pop %v723
    %vm727 = vweird.f32 %v51
    %v728 = vand.u32 %v724, 3
    %vm729 = vcmp.lt.s32.totalorder %v728, 2
    %vm730 = vcmp.eq.s32.totalorder %v728, 0
    %v731 = vxor.u32 %v726, 2147483648
    %v732 = vsel %vm730, %v725, %v731
    %vm733 = vcmp.eq.s32.totalorder %v728, 2
    %v734 = vxor.u32 %v725, 2147483648
    %v735 = vsel %vm733, %v734, %v726
    %v736 = vsel %vm729, %v732, %v735
    %v737 = vsel %vm727, nan, %v736
    %v738 = vand.u32 2147483647, %v52
    %vm739 = vcmp.le.f32.partialorder %v738, 0.7853982
    %vm740 = vcmp.lt.s32.totalorder %v52, 0
    %v741 = vand.u32 %v52, 2139095040
    %v742 = vshrl.u32 %v741, 23
    %v743 = vsub.s32 %v742, 127
    %v744 = vand.u32 2147483647, %v52
    %v745 = vand.u32 %v744, 8388607
    %v746 = vor.u32 %v745, 8388608
    %v747 = vsub.s32 0, %v746
    %v748 = vadd.s32 %v743, 1
    %vm749 = vcmp.gt.s32.totalorder %v748, 0
    %v750 = vsel %vm749, %v748, 0
    %v751 = vshrl.u32 %v750, 5
    %v752 = vand.u32 %v750, 31
    %v753 = vsub.s32 32, %v752
    %v754 = vshrl.u32 683565275, %v753
    %v755 = vshll.u32 683565275, %v752
    %v756 = vshrl.u32 2475754826, %v753
    %v757 = vor.u32 %v755, %v756
    %v758 = vshll.u32 2475754826, %v752
    %v759 = vshrl.u32 2131351028, %v753
    %v760 = vor.u32 %v758, %v759
    %v761 = vshll.u32 2131351028, %v752
    %v762 = vshrl.u32 2102212464, %v753
    %v763 = vor.u32 %v761, %v762
    %v764 = vshll.u32 2102212464, %v752
    %v765 = vshrl.u32 920167782, %v753
    %v766 = vor.u32 %v764, %v765
    %v767 = vshll.u32 920167782, %v752
    %v768 = vshrl.u32 1326507024, %v753
    %v769 = vor.u32 %v767, %v768
    %vm770 = vcmp.lt.s32.totalorder %v751, 1
    %vm771 = vcmp.lt.s32.totalorder %v751, 2
    %vm772 = vcmp.lt.s32.totalorder %v751, 3
    %vm773 = vcmp.lt.s32.totalorder %v751, 4
    %v774 = vsel %vm770, %v754, %v757
    %v775 = vsel %vm773, %v763, 2102212464
    %v776 = vsel %vm772, %v760, %v775
    %v777 = vsel %vm771, %v774, %v776
    %v778 = vsel %vm770, %v757, %v760
    %v779 = vsel %vm773, %v766, 920167782
    %v780 = vsel %vm772, %v763, %v779
    %v781 = vsel %vm771, %v778, %v780
    %v782 = vsel %vm770, %v760, %v763
    %v783 = vsel %vm773, %v769, 1326507024
    %v784 = vsel %vm772, %v766, %v783
    %v785 = vsel %vm771, %v782, %v784
    %v786 = vshll.u32 %v746, 8
    %v787 = vmul.u32.u64.compose %v786, %v785
    %v788 = vextract.low.u32 %v787
    %v789 = vextract.high.u32 %v787
    %v790 = vmul.u32.u64.compose %v786, %v781
    %v791 = vextract.low.u32 %v790
    %v792 = vextract.high.u32 %v790
    %v793 = vmul.u32 %v786, %v777
    %v794 = vadd.s32 %v789, %v791
    %vm795 = vc.u32 %v789, %v791
    %v796 = vadd.s32 %v792, 1
    %v797 = vsel %vm795, %v796, %v792
    %v798 = vadd.s32 %v793, %v797
    %v799 = vadd.s32 %v798, 536870912
    %v800 = vshrl.u32 %v799, 30
    %v801 = vshll.u32 %v800, 30
    %v802 = vsub.s32 %v798, %v801
    %vm803 = vcmp.lt.s32.totalorder %v802, 0
    %v804 = vsub.s32 0, %v802
    %v805 = vsel %vm803, %v804, %v802
    %v806 = vclz %v805
    %v807 = vsub.s32 %v806, 2
    %vm808 = vcmp.gt.s32.totalorder 0, %v807
    %v809 = vsel %vm808, 0, %v807
    %v810 = vsub.s32 32, %v809
    %v811 = vshll.u32 %v802, %v809
    %v812 = vshrl.u32 %v794, %v810
    %v813 = vor.u32 %v811, %v812
    %v814 = vsub.s32 4294967266, %v809
    %v815 = vadd.s32 %v814, 127
    %v816 = vshll.u32 %v815, 23
    %v817 = vor.u32 4788187, %v816
    %v818 = vand.u32 2147483647, %v817
    %v820 = vcvt.s32.f32 %v813
    %v821 = vmul.f32 %v820, %v818
    %v822 = vxor.u32 %v821, 2147483648
    %v823 = vsel %vm740, %v822, %v821
    %v824 = vsub.s32 4, %v800
    %v825 = vsel %vm740, %v824, %v800
    %v826 = vsel %vm739, %v52, %v823
    %v827 = vsel %vm739, 0, %v825
    %v828 = vcosq.f32.pop %v826
    %v829 = vsinq.f32.pop %v826
    %vm830 = vweird.f32 %v52
    %v831 = vand.u32 %v827, 3
    %vm832 = vcmp.lt.s32.totalorder %v831, 2
    %vm833 = vcmp.eq.s32.totalorder %v831, 0
    %v834 = vxor.u32 %v829, 2147483648
    %v835 = vsel %vm833, %v828, %v834
    %vm836 = vcmp.eq.s32.totalorder %v831, 2
    %v837 = vxor.u32 %v828, 2147483648
    %v838 = vsel %vm836, %v837, %v829
    %v839 = vsel %vm832, %v835, %v838
    %v840 = vsel %vm830, nan, %v839
    %v841 = vand.u32 2147483647, %v53
    %vm842 = vcmp.le.f32.partialorder %v841, 0.7853982
    %vm843 = vcmp.lt.s32.totalorder %v53, 0
    %v844 = vand.u32 %v53, 2139095040
    %v845 = vshrl.u32 %v844, 23
    %v846 = vsub.s32 %v845, 127
    %v847 = vand.u32 2147483647, %v53
    %v848 = vand.u32 %v847, 8388607
    %v849 = vor.u32 %v848, 8388608
    %v850 = vsub.s32 0, %v849
    %v851 = vadd.s32 %v846, 1
    %vm852 = vcmp.gt.s32.totalorder %v851, 0
    %v853 = vsel %vm852, %v851, 0
    %v854 = vshrl.u32 %v853, 5
    %v855 = vand.u32 %v853, 31
    %v856 = vsub.s32 32, %v855
    %v857 = vshrl.u32 683565275, %v856
    %v858 = vshll.u32 683565275, %v855
    %v859 = vshrl.u32 2475754826, %v856
    %v860 = vor.u32 %v858, %v859
    %v861 = vshll.u32 2475754826, %v855
    %v862 = vshrl.u32 2131351028, %v856
    %v863 = vor.u32 %v861, %v862
    %v864 = vshll.u32 2131351028, %v855
    %v865 = vshrl.u32 2102212464, %v856
    %v866 = vor.u32 %v864, %v865
    %v867 = vshll.u32 2102212464, %v855
    %v868 = vshrl.u32 920167782, %v856
    %v869 = vor.u32 %v867, %v868
    %v870 = vshll.u32 920167782, %v855
    %v871 = vshrl.u32 1326507024, %v856
    %v872 = vor.u32 %v870, %v871
    %vm873 = vcmp.lt.s32.totalorder %v854, 1
    %vm874 = vcmp.lt.s32.totalorder %v854, 2
    %vm875 = vcmp.lt.s32.totalorder %v854, 3
    %vm876 = vcmp.lt.s32.totalorder %v854, 4
    %v877 = vsel %vm873, %v857, %v860
    %v878 = vsel %vm876, %v866, 2102212464
    %v879 = vsel %vm875, %v863, %v878
    %v880 = vsel %vm874, %v877, %v879
    %v881 = vsel %vm873, %v860, %v863
    %v882 = vsel %vm876, %v869, 920167782
    %v883 = vsel %vm875, %v866, %v882
    %v884 = vsel %vm874, %v881, %v883
    %v885 = vsel %vm873, %v863, %v866
    %v886 = vsel %vm876, %v872, 1326507024
    %v887 = vsel %vm875, %v869, %v886
    %v888 = vsel %vm874, %v885, %v887
    %v889 = vshll.u32 %v849, 8
    %v890 = vmul.u32.u64.compose %v889, %v888
    %v891 = vextract.low.u32 %v890
    %v892 = vextract.high.u32 %v890
    %v893 = vmul.u32.u64.compose %v889, %v884
    %v894 = vextract.low.u32 %v893
    %v895 = vextract.high.u32 %v893
    %v896 = vmul.u32 %v889, %v880
    %v897 = vadd.s32 %v892, %v894
    %vm898 = vc.u32 %v892, %v894
    %v899 = vadd.s32 %v895, 1
    %v900 = vsel %vm898, %v899, %v895
    %v901 = vadd.s32 %v896, %v900
    %v902 = vadd.s32 %v901, 536870912
    %v903 = vshrl.u32 %v902, 30
    %v904 = vshll.u32 %v903, 30
    %v905 = vsub.s32 %v901, %v904
    %vm906 = vcmp.lt.s32.totalorder %v905, 0
    %v907 = vsub.s32 0, %v905
    %v908 = vsel %vm906, %v907, %v905
    %v909 = vclz %v908
    %v910 = vsub.s32 %v909, 2
    %vm911 = vcmp.gt.s32.totalorder 0, %v910
    %v912 = vsel %vm911, 0, %v910
    %v913 = vsub.s32 32, %v912
    %v914 = vshll.u32 %v905, %v912
    %v915 = vshrl.u32 %v897, %v913
    %v916 = vor.u32 %v914, %v915
    %v917 = vsub.s32 4294967266, %v912
    %v918 = vadd.s32 %v917, 127
    %v919 = vshll.u32 %v918, 23
    %v920 = vor.u32 4788187, %v919
    %v921 = vand.u32 2147483647, %v920
    %v923 = vcvt.s32.f32 %v916
    %v924 = vmul.f32 %v923, %v921
    %v925 = vxor.u32 %v924, 2147483648
    %v926 = vsel %vm843, %v925, %v924
    %v927 = vsub.s32 4, %v903
    %v928 = vsel %vm843, %v927, %v903
    %v929 = vsel %vm842, %v53, %v926
    %v930 = vsel %vm842, 0, %v928
    %v931 = vcosq.f32.pop %v929
    %v932 = vsinq.f32.pop %v929
    %vm933 = vweird.f32 %v53
    %v934 = vand.u32 %v930, 3
    %vm935 = vcmp.lt.s32.totalorder %v934, 2
    %vm936 = vcmp.eq.s32.totalorder %v934, 0
    %v937 = vxor.u32 %v932, 2147483648
    %v938 = vsel %vm936, %v931, %v937
    %vm939 = vcmp.eq.s32.totalorder %v934, 2
    %v940 = vxor.u32 %v931, 2147483648
    %v941 = vsel %vm939, %v940, %v932
    %v942 = vsel %vm935, %v938, %v941
    %v943 = vsel %vm933, nan, %v942
    %vm944 = vcmp.lt.s32.totalorder %v117, 73
    %v945 = vsel %vm944, 1.0, 0.0
    %v946 = vsel %vm119, %v222, %v945
    %v947 = vsel %vm119, %v325, %v945
    %v948 = vsel %vm119, %v428, %v945
    %v949 = vsel %vm119, %v531, %v945
    %v950 = vsel %vm119, %v634, %v945
    %v951 = vsel %vm119, %v737, %v945
    %v952 = vsel %vm119, %v840, %v945
    %v953 = vsel %vm119, %v943, %v945
    %v954 = vsel %vm118, %v101, %v946
    %v955 = vsel %vm118, %v103, %v947
    %v956 = vsel %vm118, %v105, %v948
    %v957 = vsel %vm118, %v107, %v949
    %v958 = vsel %vm118, %v109, %v950
    %v959 = vsel %vm118, %v111, %v951
    %v960 = vsel %vm118, %v113, %v952
    %v961 = vsel %vm118, %v115, %v953
    %v962 = vld [vmem:[#allocation5] sm:$0xff]
    %v963 = vld [vmem:[#allocation5 + $0x8] sm:$0xff]
    %v964 = vld [vmem:[#allocation5 + $0x10] sm:$0xff]
    %v965 = vld [vmem:[#allocation5 + $0x18] sm:$0xff]
    %v966 = vld [vmem:[#allocation5 + $0x20] sm:$0xff]
    %v967 = vld [vmem:[#allocation5 + $0x28] sm:$0xff]
    %v968 = vld [vmem:[#allocation5 + $0x30] sm:$0xff]
    %v969 = vld [vmem:[#allocation5 + $0x38] sm:$0xff]
    %v970 = vld [vmem:[#allocation5 + $0x40] sm:$0xff]
    %v971 = vld [vmem:[#allocation5 + $0x48] sm:$0xff]
    %v972 = vld [vmem:[#allocation5 + $0x50] sm:$0xff]
    %v973 = vld [vmem:[#allocation5 + $0x58] sm:$0xff]
    %v974 = vld [vmem:[#allocation5 + $0x60] sm:$0xff]
    %v975 = vld [vmem:[#allocation5 + $0x68] sm:$0xff]
    %v976 = vld [vmem:[#allocation5 + $0x70] sm:$0xff]
    %v977 = vld [vmem:[#allocation5 + $0x78] sm:$0xff]
    %978 = vmatprep.subr.mxu0 0.0
    %979 = vmatpush1.msra.mxu0 %v962
    %980 = vmatprep.subr.mxu0 0.0
    %981 = vmatpush1.msra.mxu0 %v963
    %982 = vmatprep.subr.mxu0 0.0
    %983 = vmatpush1.msra.mxu0 %v964
    %984 = vmatprep.subr.mxu0 0.0
    %985 = vmatpush1.msra.mxu0 %v965
    %986 = vmatprep.subr.mxu0 0.0
    %987 = vmatpush1.msra.mxu0 %v966
    %988 = vmatprep.subr.mxu0 0.0
    %989 = vmatpush1.msra.mxu0 %v967
    %990 = vmatprep.subr.mxu0 0.0
    %991 = vmatpush1.msra.mxu0 %v968
    %992 = vmatprep.subr.mxu0 0.0
    %993 = vmatpush1.msra.mxu0 %v969
    %994 = vmatprep.subr.mxu0 0.0
    %995 = vmatpush1.msra.mxu0 %v970
    %996 = vmatprep.subr.mxu0 0.0
    %997 = vmatpush1.msra.mxu0 %v971
    %998 = vmatprep.subr.mxu0 0.0
    %999 = vmatpush1.msra.mxu0 %v972
    %1000 = vmatprep.subr.mxu0 0.0
    %1001 = vmatpush1.msra.mxu0 %v973
    %1002 = vmatprep.subr.mxu0 0.0
    %1003 = vmatpush1.msra.mxu0 %v974
    %1004 = vmatprep.subr.mxu0 0.0
    %1005 = vmatpush1.msra.mxu0 %v975
    %1006 = vmatprep.subr.mxu0 0.0
    %1007 = vmatpush1.msra.mxu0 %v976
    %1008 = vmatprep.subr.mxu0 0.0
    %1009 = vmatpush1.msra.mxu0 %v977
    %1010 = vmatprep.subr.mxu0 0.0
    %1011 = vmatpush1.msra.mxu0 0.0
    %1012 = vmatprep.subr.mxu0 0.0
    %1013 = vmatpush1.msra.mxu0 0.0
    %1014 = vmatprep.subr.mxu0 0.0
    %1015 = vmatpush1.msra.mxu0 0.0
    %1016 = vmatprep.subr.mxu0 0.0
    %1017 = vmatpush1.msra.mxu0 0.0
    %1018 = vmatprep.subr.mxu0 0.0
    %1019 = vmatpush1.msra.mxu0 0.0
    %1020 = vmatprep.subr.mxu0 0.0
    %1021 = vmatpush1.msra.mxu0 0.0
    %1022 = vmatprep.subr.mxu0 0.0
    %1023 = vmatpush1.msra.mxu0 0.0
    %1024 = vmatprep.subr.mxu0 0.0
    %1025 = vmatpush1.msra.mxu0 0.0
    %1026 = vmatprep.subr.mxu0 0.0
    %1027 = vmatpush1.msra.mxu0 0.0
    %1028 = vmatprep.subr.mxu0 0.0
    %1029 = vmatpush1.msra.mxu0 0.0
    %1030 = vmatprep.subr.mxu0 0.0
    %1031 = vmatpush1.msra.mxu0 0.0
    %1032 = vmatprep.subr.mxu0 0.0
    %1033 = vmatpush1.msra.mxu0 0.0
    %1034 = vmatprep.subr.mxu0 0.0
    %1035 = vmatpush1.msra.mxu0 0.0
    %1036 = vmatprep.subr.mxu0 0.0
    %1037 = vmatpush1.msra.mxu0 0.0
    %1038 = vmatprep.subr.mxu0 0.0
    %1039 = vmatpush1.msra.mxu0 0.0
    %1040 = vmatprep.subr.mxu0 0.0
    %1041 = vmatpush1.msra.mxu0 0.0
    %1042 = vmatprep.mubr.f32.mxu0 0.0
    %1043 = vmatmul.mubr.f32.gmra.mrb[0].mxu0 %v954
    %v1044 = vpop.f32.mrb[0].mxu0
    %v1045 = vadd.f32 0.0, %v1044
    %v1046 = vpop.f32.mrb[0].mxu0
    %1047 = vmatprep.mubr.f32.mxu0 0.0
    %1048 = vmatmul.mubr.f32.gmra.mrb[0].mxu0 %v955
    %v1049 = vpop.f32.mrb[0].mxu0
    %v1050 = vadd.f32 0.0, %v1049
    %v1051 = vpop.f32.mrb[0].mxu0
    %1052 = vmatprep.mubr.f32.mxu0 0.0
    %1053 = vmatmul.mubr.f32.gmra.mrb[0].mxu0 %v956
    %v1054 = vpop.f32.mrb[0].mxu0
    %v1055 = vadd.f32 0.0, %v1054
    %v1056 = vpop.f32.mrb[0].mxu0
    %1057 = vmatprep.mubr.f32.mxu0 0.0
    %1058 = vmatmul.mubr.f32.gmra.mrb[0].mxu0 %v957
    %v1059 = vpop.f32.mrb[0].mxu0
    %v1060 = vadd.f32 0.0, %v1059
    %v1061 = vpop.f32.mrb[0].mxu0
    %1062 = vmatprep.mubr.f32.mxu0 0.0
    %1063 = vmatmul.mubr.f32.gmra.mrb[0].mxu0 %v958
    %v1064 = vpop.f32.mrb[0].mxu0
    %v1065 = vadd.f32 0.0, %v1064
    %v1066 = vpop.f32.mrb[0].mxu0
    %1067 = vmatprep.mubr.f32.mxu0 0.0
    %1068 = vmatmul.mubr.f32.gmra.mrb[0].mxu0 %v959
    %v1069 = vpop.f32.mrb[0].mxu0
    %v1070 = vadd.f32 0.0, %v1069
    %v1071 = vpop.f32.mrb[0].mxu0
    %1072 = vmatprep.mubr.f32.mxu0 0.0
    %1073 = vmatmul.mubr.f32.gmra.mrb[0].mxu0 %v960
    %v1074 = vpop.f32.mrb[0].mxu0
    %v1075 = vadd.f32 0.0, %v1074
    %v1076 = vpop.f32.mrb[0].mxu0
    %1077 = vmatprep.mubr.f32.mxu0 0.0
    %1078 = vmatmul.mubr.f32.gmra.mrb[0].mxu0 %v961
    %v1079 = vpop.f32.mrb[0].mxu0
    %v1080 = vadd.f32 0.0, %v1079
    %v1081 = vpop.f32.mrb[0].mxu0
    %1082 = vdwg.mxu0
    %1083 = vst [vmem:[#allocation7] sm:$0xff] %v1045
    %1084 = vst [vmem:[#allocation7 + $0x8] sm:$0xff] %v1050
    %1085 = vst [vmem:[#allocation7 + $0x10] sm:$0xff] %v1055
    %1086 = vst [vmem:[#allocation7 + $0x18] sm:$0xff] %v1060
    %1087 = vst [vmem:[#allocation7 + $0x20] sm:$0xff] %v1065
    %1088 = vst [vmem:[#allocation7 + $0x28] sm:$0xff] %v1070
    %1089 = vst [vmem:[#allocation7 + $0x30] sm:$0xff] %v1075
    %1090 = vst [vmem:[#allocation7 + $0x38] sm:$0xff] %v1080
    // Predicated region
    $region26: #{tpu_custom_call.1} parent=1 // pred_check
      _
    $region27: #{tpu_custom_call.1} parent=1 // pred_check_branch
      %1092 = sbr.rel (0) target = $region29
    $region28: #{tpu_custom_call.1} parent=1 // pred_region
      %s1094 = ssub.s32 1024, 1024
      %1095 = vsyncadd [#allocation4], %s1094
      %s1096 = sshll.u32 [#allocation7], 4
      %s1097 = int_to_ptr.vmem [resolvable:$true] %s1096
      %1102 = dma.vmem_to_hbm [thread:$0]  %s1097, 1024, %s4, [#allocation4], 128, 128, 8
    $region29: #{tpu_custom_call.1} parent=1 // pred_fallthru
      _
    // Predicated region
    $region30: #{tpu_custom_call.1} parent=1 // pred_check
      _
    $region31: #{tpu_custom_call.1} parent=1 // pred_check_branch
      %1104 = sbr.rel (0) target = $region33
    $region32: #{tpu_custom_call.1} parent=1 // pred_region
      %1105 = dma.done [#allocation4], 1024
    $region33: #{tpu_custom_call.1} parent=1 // pred_fallthru
      _
    %1106 = vsyncpa [#allocation3], 1
    %1107 = vsyncpa [#allocation6], 1
    %1108 = vsyncpa [#allocation4], 1

</llo_original>
